<compile_context>
chip_gen: v6e
topology: v6e:2x2x1
jax: 0.10.0
libtpu: 0.0.40
codegen_flags: <defaults>
</compile_context>

<pallas_src>
import functools

import jax
import jax.numpy as jnp
from jax.experimental import pallas as pl
from jax.experimental.pallas import tpu as pltpu

# logical dims of the torch module
H1 = 64
H2 = 256
OUT = 1025

# lane-padded dims used by the kernel
H1_P = 128     # 64   -> 128   (lane-dense hidden, clean MXU K for layer 2)
OUT_P = 1152   # 1025 -> 9*128 (lane-dense output stores)


def _round_up(n, m):
    return (n + m - 1) // m * m


def _leaky_relu(x, slope=0.01):
    return jnp.where(x > 0, x, slope * x)


def _stable_sigmoid(x):
    # sigmoid(x) = 1/(1+exp(-x)) for x>=0, exp(x)/(1+exp(x)) = 1 - 1/(1+exp(-|x|)) for x<0
    # exp(-|x|) <= 1 -> no overflow; reciprocal goes to the EUP.
    e = jnp.exp(-jnp.abs(x))
    pos = pl.reciprocal(1.0 + e, approx=True)
    return jnp.where(x >= 0, pos, 1.0 - pos)


def generator_kernel(x_ref, w1_ref, b1_ref, w2_ref, b2_ref, w3_ref, b3_ref, o_ref):
    """Fused 3-layer MLP on one batch tile.

    bf16 matmuls with f32 accumulation on the MXU, LeakyReLU on the VPU,
    sigmoid exp/reciprocal on the EUP. All weights stay VMEM-resident across
    grid steps (constant index_map).
    """
    x = x_ref[...]                                                       # (TM, IN) bf16

    h1 = jnp.dot(x, w1_ref[...], preferred_element_type=jnp.float32) + b1_ref[...]
    h1 = _leaky_relu(h1).astype(jnp.bfloat16)                            # (TM, 128)

    h2 = jnp.dot(h1, w2_ref[...], preferred_element_type=jnp.float32) + b2_ref[...]
    h2 = _leaky_relu(h2).astype(jnp.bfloat16)                            # (TM, 256)

    h3 = jnp.dot(h2, w3_ref[...], preferred_element_type=jnp.float32) + b3_ref[...]
    o_ref[...] = _stable_sigmoid(h3)                                     # (TM, 1152) f32


def init_params(key, input_size):
    """Deterministic init matching torch.nn.Linear default (uniform +/- 1/sqrt(fan_in)).

    Returns logical (unpadded) f32 params: W as (in, out), b as (1, out).
    """
    dims = [(input_size, H1), (H1, H2), (H2, OUT)]
    params = []
    for (fan_in, fan_out) in dims:
        key, kw, kb = jax.random.split(key, 3)
        bound = 1.0 / (fan_in ** 0.5)
        w = jax.random.uniform(kw, (fan_in, fan_out), jnp.float32, -bound, bound)
        b = jax.random.uniform(kb, (1, fan_out), jnp.float32, -bound, bound)
        params += [w, b]
    return tuple(params)


def pack_params(params):
    """One-time packing: cast weights to bf16 and zero-pad to lane-dense shapes."""
    w1, b1, w2, b2, w3, b3 = params
    in_dim = w1.shape[0]

    w1p = jnp.zeros((in_dim, H1_P), jnp.bfloat16).at[:, :H1].set(w1.astype(jnp.bfloat16))
    b1p = jnp.zeros((1, H1_P), jnp.float32).at[:, :H1].set(b1)

    w2p = jnp.zeros((H1_P, H2), jnp.bfloat16).at[:H1, :].set(w2.astype(jnp.bfloat16))
    b2p = b2.astype(jnp.float32)

    w3p = jnp.zeros((H2, OUT_P), jnp.bfloat16).at[:, :OUT].set(w3.astype(jnp.bfloat16))
    b3p = jnp.zeros((1, OUT_P), jnp.float32).at[:, :OUT].set(b3)

    return (w1p, b1p, w2p, b2p, w3p, b3p)


@jax.jit
def generator_forward(x, packed_params):
    w1, b1, w2, b2, w3, b3 = packed_params
    B, in_dim = x.shape

    # Batch tile: fill the MXU M dim when batch is large, stay whole-batch when tiny.
    TM = min(256, _round_up(B, 8))
    B_pad = _round_up(B, TM)

    xb = x.astype(jnp.bfloat16)
    if B_pad != B:
        xb = jnp.pad(xb, ((0, B_pad - B), (0, 0)))

    out = pl.pallas_call(
        generator_kernel,
        out_shape=jax.ShapeDtypeStruct((B_pad, OUT_P), jnp.float32),
        grid=(B_pad // TM,),
        in_specs=[
            pl.BlockSpec((TM, in_dim), lambda i: (i, 0)),      # x: batch-tiled
            pl.BlockSpec((in_dim, H1_P), lambda i: (0, 0)),    # w1: VMEM-resident
            pl.BlockSpec((1, H1_P), lambda i: (0, 0)),         # b1
            pl.BlockSpec((H1_P, H2), lambda i: (0, 0)),        # w2
            pl.BlockSpec((1, H2), lambda i: (0, 0)),           # b2
            pl.BlockSpec((H2, OUT_P), lambda i: (0, 0)),       # w3
            pl.BlockSpec((1, OUT_P), lambda i: (0, 0)),        # b3
        ],
        out_specs=pl.BlockSpec((TM, OUT_P), lambda i: (i, 0)),
        compiler_params=pltpu.CompilerParams(
            dimension_semantics=("parallel",),                  # shard batch tiles across TCs (v7x)
        ),
    )(xb, w1, b1, w2, b2, w3, b3)

    return out[:B, :OUT]


def reference_forward(x, params):
    """Pure-JAX f32 reference matching the PyTorch module."""
    w1, b1, w2, b2, w3, b3 = params
    h1 = _leaky_relu(x @ w1 + b1)
    h2 = _leaky_relu(h1 @ w2 + b2)
    return jax.nn.sigmoid(h2 @ w3 + b3)


if __name__ == "__main__":
    key = jax.random.PRNGKey(0)
    key, kx = jax.random.split(key)

    batch = 8
    input_size = 32  # small synthetic latent size

    x = jax.random.normal(kx, (batch, input_size), jnp.float32)
    params = init_params(key, input_size)       # logical f32 params (torch semantics)
    packed = pack_params(params)                 # bf16 + lane-padded, done once

    out = generator_forward(x, packed)
    out = jax.block_until_ready(out)

    ref = reference_forward(x, params)
    assert out.shape == (batch, OUT), out.shape
    # bf16 weights/activations vs f32 reference -> loosened tolerance
    max_err = float(jnp.max(jnp.abs(out - ref)))
    assert jnp.allclose(out, ref, atol=2e-2, rtol=2e-2), f"mismatch vs reference, max_err={max_err}"

    print("KERNEL_OK")
</pallas_src>

<mosaic_0001>
module attributes {stable_mosaic.version = 11 : i64} {
  func.func @generator_kernel(%arg0: i32, %arg1: memref<8x32xbf16, #tpu.memory_space<vmem>>, %arg2: memref<32x128xbf16, #tpu.memory_space<vmem>>, %arg3: memref<1x128xf32, #tpu.memory_space<vmem>>, %arg4: memref<128x256xbf16, #tpu.memory_space<vmem>>, %arg5: memref<1x256xf32, #tpu.memory_space<vmem>>, %arg6: memref<256x1152xbf16, #tpu.memory_space<vmem>>, %arg7: memref<1x1152xf32, #tpu.memory_space<vmem>>, %arg8: memref<8x1152xf32, #tpu.memory_space<vmem>>) attributes {dimension_semantics = [#tpu.dimension_semantics<parallel>], iteration_bounds = array<i64: 1>, scalar_prefetch = 0 : i64, scratch_operands = 0 : i64, tpu.core_type = #tpu.core_type<tc>, window_params = [{transform_indices = @transform_0, window_bounds = array<i64: 8, 32>}, {pipeline_mode = #tpu.pipeline_mode<synchronous>, transform_indices = @transform_1, window_bounds = array<i64: 32, 128>}, {pipeline_mode = #tpu.pipeline_mode<synchronous>, transform_indices = @transform_2, window_bounds = array<i64: 1, 128>}, {pipeline_mode = #tpu.pipeline_mode<synchronous>, transform_indices = @transform_3, window_bounds = array<i64: 128, 256>}, {pipeline_mode = #tpu.pipeline_mode<synchronous>, transform_indices = @transform_4, window_bounds = array<i64: 1, 256>}, {pipeline_mode = #tpu.pipeline_mode<synchronous>, transform_indices = @transform_5, window_bounds = array<i64: 256, 1152>}, {pipeline_mode = #tpu.pipeline_mode<synchronous>, transform_indices = @transform_6, window_bounds = array<i64: 1, 1152>}, {transform_indices = @transform_7, window_bounds = array<i64: 8, 1152>}]} {
    %c0 = arith.constant 0 : index
    %c0_0 = arith.constant 0 : index
    %0 = vector.load %arg1[%c0, %c0_0] : memref<8x32xbf16, #tpu.memory_space<vmem>>, vector<8x32xbf16>
    %c0_1 = arith.constant 0 : index
    %c0_2 = arith.constant 0 : index
    %1 = vector.load %arg2[%c0_1, %c0_2] : memref<32x128xbf16, #tpu.memory_space<vmem>>, vector<32x128xbf16>
    %cst = arith.constant dense<0.000000e+00> : vector<8x128xf32>
    %2 = tpu.matmul %0, %1, %cst {dimension_numbers = #tpu.dot_dimension_numbers<[1], [0], [0], [1], [0, 0, 1, 1], [], []>} : vector<8x32xbf16>, vector<32x128xbf16>, vector<8x128xf32> -> vector<8x128xf32>
    %c0_3 = arith.constant 0 : index
    %c0_4 = arith.constant 0 : index
    %3 = vector.load %arg3[%c0_3, %c0_4] : memref<1x128xf32, #tpu.memory_space<vmem>>, vector<1x128xf32>
    %4 = vector.broadcast %3 : vector<1x128xf32> to vector<8x128xf32>
    %5 = arith.addf %2, %4 : vector<8x128xf32>
    %cst_5 = arith.constant 0.000000e+00 : f32
    %6 = vector.broadcast %cst_5 : f32 to vector<8x128xf32>
    %7 = arith.cmpf ogt, %5, %6 : vector<8x128xf32>
    %cst_6 = arith.constant 0.00999999977 : f32
    %8 = vector.broadcast %cst_6 : f32 to vector<8x128xf32>
    %9 = arith.mulf %8, %5 : vector<8x128xf32>
    %10 = arith.select %7, %5, %9 : vector<8x128xi1>, vector<8x128xf32>
    %11 = arith.truncf %10 : vector<8x128xf32> to vector<8x128xbf16>
    %c0_7 = arith.constant 0 : index
    %c0_8 = arith.constant 0 : index
    %12 = vector.load %arg4[%c0_7, %c0_8] : memref<128x256xbf16, #tpu.memory_space<vmem>>, vector<128x256xbf16>
    %cst_9 = arith.constant dense<0.000000e+00> : vector<8x256xf32>
    %13 = tpu.matmul %11, %12, %cst_9 {dimension_numbers = #tpu.dot_dimension_numbers<[1], [0], [0], [1], [0, 0, 1, 1], [], []>} : vector<8x128xbf16>, vector<128x256xbf16>, vector<8x256xf32> -> vector<8x256xf32>
    %c0_10 = arith.constant 0 : index
    %c0_11 = arith.constant 0 : index
    %14 = vector.load %arg5[%c0_10, %c0_11] : memref<1x256xf32, #tpu.memory_space<vmem>>, vector<1x256xf32>
    %15 = vector.broadcast %14 : vector<1x256xf32> to vector<8x256xf32>
    %16 = arith.addf %13, %15 : vector<8x256xf32>
    %cst_12 = arith.constant 0.000000e+00 : f32
    %17 = vector.broadcast %cst_12 : f32 to vector<8x256xf32>
    %18 = arith.cmpf ogt, %16, %17 : vector<8x256xf32>
    %cst_13 = arith.constant 0.00999999977 : f32
    %19 = vector.broadcast %cst_13 : f32 to vector<8x256xf32>
    %20 = arith.mulf %19, %16 : vector<8x256xf32>
    %21 = arith.select %18, %16, %20 : vector<8x256xi1>, vector<8x256xf32>
    %22 = arith.truncf %21 : vector<8x256xf32> to vector<8x256xbf16>
    %c0_14 = arith.constant 0 : index
    %c0_15 = arith.constant 0 : index
    %23 = vector.load %arg6[%c0_14, %c0_15] : memref<256x1152xbf16, #tpu.memory_space<vmem>>, vector<256x1152xbf16>
    %cst_16 = arith.constant dense<0.000000e+00> : vector<8x1152xf32>
    %24 = tpu.matmul %22, %23, %cst_16 {dimension_numbers = #tpu.dot_dimension_numbers<[1], [0], [0], [1], [0, 0, 1, 1], [], []>} : vector<8x256xbf16>, vector<256x1152xbf16>, vector<8x1152xf32> -> vector<8x1152xf32>
    %c0_17 = arith.constant 0 : index
    %c0_18 = arith.constant 0 : index
    %25 = vector.load %arg7[%c0_17, %c0_18] : memref<1x1152xf32, #tpu.memory_space<vmem>>, vector<1x1152xf32>
    %26 = vector.broadcast %25 : vector<1x1152xf32> to vector<8x1152xf32>
    %27 = arith.addf %24, %26 : vector<8x1152xf32>
    %28 = math.absf %27 : vector<8x1152xf32>
    %cst_19 = arith.constant 0.000000e+00 : f32
    %29 = vector.broadcast %cst_19 : f32 to vector<8x1152xf32>
    %30 = arith.subf %29, %28 : vector<8x1152xf32>
    %31 = math.exp %30 : vector<8x1152xf32>
    %cst_20 = arith.constant 1.000000e+00 : f32
    %32 = vector.broadcast %cst_20 : f32 to vector<8x1152xf32>
    %33 = arith.addf %32, %31 : vector<8x1152xf32>
    %34 = tpu.reciprocal %33 {approx = true} : vector<8x1152xf32> -> vector<8x1152xf32>
    %cst_21 = arith.constant 0.000000e+00 : f32
    %35 = vector.broadcast %cst_21 : f32 to vector<8x1152xf32>
    %36 = arith.cmpf oge, %27, %35 : vector<8x1152xf32>
    %cst_22 = arith.constant 1.000000e+00 : f32
    %37 = vector.broadcast %cst_22 : f32 to vector<8x1152xf32>
    %38 = arith.subf %37, %34 : vector<8x1152xf32>
    %39 = arith.select %36, %34, %38 : vector<8x1152xi1>, vector<8x1152xf32>
    %c0_23 = arith.constant 0 : index
    %c0_24 = arith.constant 0 : index
    %40 = vector.load %arg8[%c0_23, %c0_24] : memref<8x1152xf32, #tpu.memory_space<vmem>>, vector<8x1152xf32>
    tpu.vector_store %arg8[%c0_23, %c0_24], %39 {strides = array<i32>} : memref<8x1152xf32, #tpu.memory_space<vmem>>, vector<8x1152xf32>,
    return
  }
  func.func @transform_0(%arg0: i32) -> (i32, i32) {
    %c0_i32 = arith.constant 0 : i32
    %c0_i32_0 = arith.constant 0 : i32
    return %arg0, %c0_i32 : i32, i32
  }
  func.func @transform_1(%arg0: i32) -> (i32, i32) {
    %c0_i32 = arith.constant 0 : i32
    %c0_i32_0 = arith.constant 0 : i32
    %c0_i32_1 = arith.constant 0 : i32
    return %c0_i32, %c0_i32_0 : i32, i32
  }
  func.func @transform_2(%arg0: i32) -> (i32, i32) {
    %c0_i32 = arith.constant 0 : i32
    %c0_i32_0 = arith.constant 0 : i32
    %c0_i32_1 = arith.constant 0 : i32
    return %c0_i32, %c0_i32_0 : i32, i32
  }
  func.func @transform_3(%arg0: i32) -> (i32, i32) {
    %c0_i32 = arith.constant 0 : i32
    %c0_i32_0 = arith.constant 0 : i32
    %c0_i32_1 = arith.constant 0 : i32
    return %c0_i32, %c0_i32_0 : i32, i32
  }
  func.func @transform_4(%arg0: i32) -> (i32, i32) {
    %c0_i32 = arith.constant 0 : i32
    %c0_i32_0 = arith.constant 0 : i32
    %c0_i32_1 = arith.constant 0 : i32
    return %c0_i32, %c0_i32_0 : i32, i32
  }
  func.func @transform_5(%arg0: i32) -> (i32, i32) {
    %c0_i32 = arith.constant 0 : i32
    %c0_i32_0 = arith.constant 0 : i32
    %c0_i32_1 = arith.constant 0 : i32
    return %c0_i32, %c0_i32_0 : i32, i32
  }
  func.func @transform_6(%arg0: i32) -> (i32, i32) {
    %c0_i32 = arith.constant 0 : i32
    %c0_i32_0 = arith.constant 0 : i32
    %c0_i32_1 = arith.constant 0 : i32
    return %c0_i32, %c0_i32_0 : i32, i32
  }
  func.func @transform_7(%arg0: i32) -> (i32, i32) {
    %c0_i32 = arith.constant 0 : i32
    %c0_i32_0 = arith.constant 0 : i32
    return %arg0, %c0_i32 : i32, i32
  }
}

</mosaic_0001>

<llo_original>
// kernel: generator_forward.1
$region0: #{generator_forward.1}
  #allocation0 [shape = 'u32[]', space=smem, size = 0x4, offset = 0x4, fixed_abs, tag = 'smem constant byte address 0x4 - core index']
  #allocation1 [shape = 'u32[144,128]{1,0:T(1,128)}', space=vmem, size = 0x12000, scoped, tag = 'internal scratch']
  %s0 = inlined_call_operand.vmem [shape: bf16[8,32], index: 0, kind: input, shape index: {}]
  %s1 = inlined_call_operand.hbm [shape: bf16[32,128], index: 1, kind: input, shape index: {}]
  %s2 = inlined_call_operand.vmem [shape: f32[1,128], index: 2, kind: input, shape index: {}]
  %s3 = inlined_call_operand.hbm [shape: bf16[128,256], index: 3, kind: input, shape index: {}]
  %s4 = inlined_call_operand.vmem [shape: f32[1,256], index: 4, kind: input, shape index: {}]
  %s5 = inlined_call_operand.hbm [shape: bf16[256,1152], index: 5, kind: input, shape index: {}]
  %s6 = inlined_call_operand.vmem [shape: f32[1,1152], index: 6, kind: input, shape index: {}]
  %s7 = inlined_call_operand.hbm [shape: f32[8,1152], index: 7, kind: output, shape index: {}]
  %s8 = sld [smem:[#allocation0]]
  $region50: #{generator_forward.1} parent=0
    _
  %s10 = ssub.s32 1, %s8
  %s11 = scalar_select 0, %s10, %s8
  $region1: #{generator_forward.1} parent=0
    #allocation2 [shape = 'u8[8192]{0}', space=vmem, size = 0x2000, scoped, tag = 'input window, operand 1, single buffered']
    #allocation3 [shape = 's32[1]{0}', space=sflag, size = 0x4, scoped, tag = 'scoped memory for generator_forward.1']
    #allocation4 [shape = 's32[1]{0}', space=sflag, size = 0x4, scoped, tag = 'scoped memory for generator_forward.1']
    #allocation5 [shape = 'u8[65536]{0}', space=vmem, size = 0x10000, scoped, tag = 'input window, operand 3, single buffered']
    #allocation6 [shape = 's32[1]{0}', space=sflag, size = 0x4, scoped, tag = 'scoped memory for generator_forward.1']
    #allocation7 [shape = 'u8[589824]{0}', space=vmem, size = 0x90000, scoped, tag = 'input window, operand 5, single buffered']
    #allocation8 [shape = 'u8[36864]{0}', space=vmem, size = 0x9000, scoped, tag = 'output window, operand 0, single buffered']
    %12 = vsyncpa [#allocation3], 0
    %13 = vsyncpa [#allocation6], 0
    %14 = vsyncpa [#allocation4], 0
    // Predicated region
    $region2: #{generator_forward.1} parent=1 // pred_check
      _
    $region3: #{generator_forward.1} parent=1 // pred_check_branch
      %16 = sbr.rel (0) target = $region5
    $region4: #{generator_forward.1} parent=1 // pred_region
      _
    $region5: #{generator_forward.1} parent=1 // pred_fallthru
      _
    // Predicated region
    $region6: #{generator_forward.1} parent=1 // pred_check
      _
    $region7: #{generator_forward.1} parent=1 // pred_check_branch
      %18 = sbr.rel (0) target = $region9
    $region8: #{generator_forward.1} parent=1 // pred_region
      %s20 = ssub.s32 256, 256
      %21 = vsyncadd [#allocation3], %s20
      %s22 = sshll.u32 [#allocation2], 4
      %s23 = int_to_ptr.vmem [resolvable:$true] %s22
      %28 = dma.hbm_to_vmem [thread:$0]  %s1, 256, %s23, [#allocation3], 64, 64, 4
    $region9: #{generator_forward.1} parent=1 // pred_fallthru
      _
    // Predicated region
    $region10: #{generator_forward.1} parent=1 // pred_check
      _
    $region11: #{generator_forward.1} parent=1 // pred_check_branch
      %30 = sbr.rel (0) target = $region13
    $region12: #{generator_forward.1} parent=1 // pred_region
      _
    $region13: #{generator_forward.1} parent=1 // pred_fallthru
      _
    // Predicated region
    $region14: #{generator_forward.1} parent=1 // pred_check
      _
    $region15: #{generator_forward.1} parent=1 // pred_check_branch
      %32 = sbr.rel (0) target = $region17
    $region16: #{generator_forward.1} parent=1 // pred_region
      %s34 = ssub.s32 2048, 2048
      %35 = vsyncadd [#allocation6], %s34
      %s36 = sshll.u32 [#allocation5], 4
      %s37 = int_to_ptr.vmem [resolvable:$true] %s36
      %42 = dma.hbm_to_vmem [thread:$0]  %s3, 2048, %s37, [#allocation6], 128, 128, 8
    $region17: #{generator_forward.1} parent=1 // pred_fallthru
      _
    // Predicated region
    $region18: #{generator_forward.1} parent=1 // pred_check
      _
    $region19: #{generator_forward.1} parent=1 // pred_check_branch
      %44 = sbr.rel (0) target = $region21
    $region20: #{generator_forward.1} parent=1 // pred_region
      _
    $region21: #{generator_forward.1} parent=1 // pred_fallthru
      _
    // Predicated region
    $region22: #{generator_forward.1} parent=1 // pred_check
      _
    $region23: #{generator_forward.1} parent=1 // pred_check_branch
      %46 = sbr.rel (0) target = $region25
    $region24: #{generator_forward.1} parent=1 // pred_region
      %s48 = ssub.s32 18432, 18432
      %49 = vsyncadd [#allocation6], %s48
      %s50 = sshll.u32 [#allocation7], 4
      %s51 = int_to_ptr.vmem [resolvable:$true] %s50
      %56 = dma.hbm_to_vmem [thread:$0]  %s5, 18432, %s51, [#allocation6], 576, 576, 36
    $region25: #{generator_forward.1} parent=1 // pred_fallthru
      _
    // Predicated region
    $region26: #{generator_forward.1} parent=1 // pred_check
      _
    $region27: #{generator_forward.1} parent=1 // pred_check_branch
      %58 = sbr.rel (0) target = $region29
    $region28: #{generator_forward.1} parent=1 // pred_region
      _
    $region29: #{generator_forward.1} parent=1 // pred_fallthru
      _
    // Predicated region
    $region30: #{generator_forward.1} parent=1 // pred_check
      _
    $region31: #{generator_forward.1} parent=1 // pred_check_branch
      %60 = sbr.rel (0) target = $region33
    $region32: #{generator_forward.1} parent=1 // pred_region
      %61 = dma.done [#allocation3], 256
    $region33: #{generator_forward.1} parent=1 // pred_fallthru
      _
    // Predicated region
    $region34: #{generator_forward.1} parent=1 // pred_check
      _
    $region35: #{generator_forward.1} parent=1 // pred_check_branch
      %63 = sbr.rel (0) target = $region37
    $region36: #{generator_forward.1} parent=1 // pred_region
      %64 = dma.done [#allocation6], 2048
    $region37: #{generator_forward.1} parent=1 // pred_fallthru
      _
    // Predicated region
    $region38: #{generator_forward.1} parent=1 // pred_check
      _
    $region39: #{generator_forward.1} parent=1 // pred_check_branch
      %66 = sbr.rel (0) target = $region41
    $region40: #{generator_forward.1} parent=1 // pred_region
      %67 = dma.done [#allocation6], 18432
    $region41: #{generator_forward.1} parent=1 // pred_fallthru
      _
    %v69 = vld [vmem:[%s0] sm:$0xf]
    %v70 = vld [vmem:[#allocation2] sm:$0xf]
    %v71 = vld [vmem:[#allocation2 + $0x4] sm:$0xf]
    %v72 = vld [vmem:[#allocation2 + $0x8] sm:$0xf]
    %v73 = vld [vmem:[#allocation2 + $0xc] sm:$0xf]
    %v74 = vld [vmem:[%s2] sm:$0x1]
    %v76 = vlaneseq
    %v77 = vshrl.u32 %v76, 7
    %v78 = vsub.s32 0, %v77
    %v79 = vrot.slane %v74, %v78
    %v85 = vunpack.c.l.b16 %v70
    %v86 = vunpack.c.l.b16 %v71
    %v87 = vunpack.c.l.b16 %v72
    %v88 = vunpack.c.l.b16 %v73
    %v89 = vpack.c.b16 %v86, %v85
    %v90 = vpack.c.b16 %v88, %v87
    %vm93 = vcmask 261120
    %v95 = vsel %vm93, %v69, 0
    %97 = vmatprep.subr.bf16.mxu0 0
    %98 = vmatpush1.bf16.msra.mxu0 0
    %99 = vmatprep.subr.bf16.mxu0 0
    %100 = vmatpush1.bf16.msra.mxu0 0
    %101 = vmatprep.subr.bf16.mxu0 0
    %102 = vmatpush1.bf16.msra.mxu0 0
    %103 = vmatprep.subr.bf16.mxu0 0
    %104 = vmatpush1.bf16.msra.mxu0 0
    %105 = vmatprep.subr.bf16.mxu0 0
    %106 = vmatpush1.bf16.msra.mxu0 0
    %107 = vmatprep.subr.bf16.mxu0 0
    %108 = vmatpush1.bf16.msra.mxu0 0
    %109 = vmatprep.subr.bf16.mxu0 0
    %110 = vmatpush1.bf16.msra.mxu0 %v90
    %111 = vmatprep.subr.bf16.mxu0 0
    %112 = vmatpush1.bf16.msra.mxu0 %v89
    %113 = vmatprep.subr.bf16.mxu0 0
    %114 = vmatpush2.bf16.msra.mxu0 0
    %115 = vmatprep.subr.bf16.mxu0 0
    %116 = vmatpush2.bf16.msra.mxu0 0
    %117 = vmatprep.subr.bf16.mxu0 0
    %118 = vmatpush2.bf16.msra.mxu0 0
    %119 = vmatprep.subr.bf16.mxu0 0
    %120 = vmatpush2.bf16.msra.mxu0 0
    %121 = vmatprep.subr.bf16.mxu0 0
    %122 = vmatpush2.bf16.msra.mxu0 0
    %123 = vmatprep.subr.bf16.mxu0 0
    %124 = vmatpush2.bf16.msra.mxu0 0
    %125 = vmatprep.subr.bf16.mxu0 0
    %126 = vmatpush2.bf16.msra.mxu0 0
    %127 = vmatprep.subr.bf16.mxu0 0
    %128 = vmatpush2.bf16.msra.mxu0 0
    %129 = vmatprep.mubr.bf16.mxu0 0
    %130 = vmatmul.mubr.bf16.gmra.mxu0 %v95
    %v131 = vpop.f32.mrf.mxu0
    %v132 = vadd.f32 %v79, %v131
    %v133 = vpop.f32.mrf.mxu0
    %v134 = vpop.f32.mrf.mxu0
    %v135 = vpop.f32.mrf.mxu0
    %136 = vdwg.mxu0
    %vm137 = vcmp.gt.f32.partialorder %v132, 0.0
    %v138 = vmul.f32 %v132, 0.01
    %v139 = vsel %vm137, %v132, %v138
    %v140 = vpack.c.bf16 %v139, %v139
    %v141 = vld [vmem:[#allocation5] sm:$0xff]
    %v142 = vld [vmem:[#allocation5 + $0x8] sm:$0xff]
    %v143 = vld [vmem:[#allocation5 + $0x10] sm:$0xff]
    %v144 = vld [vmem:[#allocation5 + $0x18] sm:$0xff]
    %v145 = vld [vmem:[#allocation5 + $0x20] sm:$0xff]
    %v146 = vld [vmem:[#allocation5 + $0x28] sm:$0xff]
    %v147 = vld [vmem:[#allocation5 + $0x30] sm:$0xff]
    %v148 = vld [vmem:[#allocation5 + $0x38] sm:$0xff]
    %v149 = vld [vmem:[#allocation5 + $0x40] sm:$0xff]
    %v150 = vld [vmem:[#allocation5 + $0x48] sm:$0xff]
    %v151 = vld [vmem:[#allocation5 + $0x50] sm:$0xff]
    %v152 = vld [vmem:[#allocation5 + $0x58] sm:$0xff]
    %v153 = vld [vmem:[#allocation5 + $0x60] sm:$0xff]
    %v154 = vld [vmem:[#allocation5 + $0x68] sm:$0xff]
    %v155 = vld [vmem:[#allocation5 + $0x70] sm:$0xff]
    %v156 = vld [vmem:[#allocation5 + $0x78] sm:$0xff]
    %v157 = vld [vmem:[%s4] sm:$0x3]
    %v159 = vlaneseq
    %v160 = vshrl.u32 %v159, 7
    %v161 = vsub.s32 0, %v160
    %v162 = vrot.slane %v157, %v161
    %v163 = vlaneseq
    %v164 = vshrl.u32 %v163, 7
    %v165 = vsub.s32 1, %v164
    %v166 = vrot.slane %v157, %v165
    %v185 = vunpack.c.l.b16 %v141
    %v186 = vunpack.c.h.b16 %v141
    %v187 = vunpack.c.l.b16 %v142
    %v188 = vunpack.c.h.b16 %v142
    %v189 = vunpack.c.l.b16 %v143
    %v190 = vunpack.c.h.b16 %v143
    %v191 = vunpack.c.l.b16 %v144
    %v192 = vunpack.c.h.b16 %v144
    %v193 = vunpack.c.l.b16 %v145
    %v194 = vunpack.c.h.b16 %v145
    %v195 = vunpack.c.l.b16 %v146
    %v196 = vunpack.c.h.b16 %v146
    %v197 = vunpack.c.l.b16 %v147
    %v198 = vunpack.c.h.b16 %v147
    %v199 = vunpack.c.l.b16 %v148
    %v200 = vunpack.c.h.b16 %v148
    %v201 = vunpack.c.l.b16 %v149
    %v202 = vunpack.c.h.b16 %v149
    %v203 = vunpack.c.l.b16 %v150
    %v204 = vunpack.c.h.b16 %v150
    %v205 = vunpack.c.l.b16 %v151
    %v206 = vunpack.c.h.b16 %v151
    %v207 = vunpack.c.l.b16 %v152
    %v208 = vunpack.c.h.b16 %v152
    %v209 = vunpack.c.l.b16 %v153
    %v210 = vunpack.c.h.b16 %v153
    %v211 = vunpack.c.l.b16 %v154
    %v212 = vunpack.c.h.b16 %v154
    %v213 = vunpack.c.l.b16 %v155
    %v214 = vunpack.c.h.b16 %v155
    %v215 = vunpack.c.l.b16 %v156
    %v216 = vunpack.c.h.b16 %v156
    %v217 = vpack.c.b16 %v187, %v185
    %v218 = vpack.c.b16 %v188, %v186
    %v219 = vpack.c.b16 %v191, %v189
    %v220 = vpack.c.b16 %v192, %v190
    %v221 = vpack.c.b16 %v195, %v193
    %v222 = vpack.c.b16 %v196, %v194
    %v223 = vpack.c.b16 %v199, %v197
    %v224 = vpack.c.b16 %v200, %v198
    %v225 = vpack.c.b16 %v203, %v201
    %v226 = vpack.c.b16 %v204, %v202
    %v227 = vpack.c.b16 %v207, %v205
    %v228 = vpack.c.b16 %v208, %v206
    %v229 = vpack.c.b16 %v211, %v209
    %v230 = vpack.c.b16 %v212, %v210
    %v231 = vpack.c.b16 %v215, %v213
    %v232 = vpack.c.b16 %v216, %v214
    %249 = vmatprep.subr.bf16.mxu0 %v232
    %250 = vmatpush1.bf16.msra.mxu0 %v231
    %251 = vmatprep.subr.bf16.mxu0 %v230
    %252 = vmatpush1.bf16.msra.mxu0 %v229
    %253 = vmatprep.subr.bf16.mxu0 %v228
    %254 = vmatpush1.bf16.msra.mxu0 %v227
    %255 = vmatprep.subr.bf16.mxu0 %v226
    %256 = vmatpush1.bf16.msra.mxu0 %v225
    %257 = vmatprep.subr.bf16.mxu0 %v224
    %258 = vmatpush1.bf16.msra.mxu0 %v223
    %259 = vmatprep.subr.bf16.mxu0 %v222
    %260 = vmatpush1.bf16.msra.mxu0 %v221
    %261 = vmatprep.subr.bf16.mxu0 %v220
    %262 = vmatpush1.bf16.msra.mxu0 %v219
    %263 = vmatprep.subr.bf16.mxu0 %v218
    %264 = vmatpush1.bf16.msra.mxu0 %v217
    %265 = vmatprep.subr.bf16.mxu0 0
    %266 = vmatpush2.bf16.msra.mxu0 0
    %267 = vmatprep.subr.bf16.mxu0 0
    %268 = vmatpush2.bf16.msra.mxu0 0
    %269 = vmatprep.subr.bf16.mxu0 0
    %270 = vmatpush2.bf16.msra.mxu0 0
    %271 = vmatprep.subr.bf16.mxu0 0
    %272 = vmatpush2.bf16.msra.mxu0 0
    %273 = vmatprep.subr.bf16.mxu0 0
    %274 = vmatpush2.bf16.msra.mxu0 0
    %275 = vmatprep.subr.bf16.mxu0 0
    %276 = vmatpush2.bf16.msra.mxu0 0
    %277 = vmatprep.subr.bf16.mxu0 0
    %278 = vmatpush2.bf16.msra.mxu0 0
    %279 = vmatprep.subr.bf16.mxu0 0
    %280 = vmatpush2.bf16.msra.mxu0 0
    %281 = vmatprep.mubr.bf16.mxu0 0
    %282 = vmatmul.mubr.bf16.gmra.mxu0 %v140
    %v283 = vpop.f32.mrf.mxu0
    %v284 = vadd.f32 %v162, %v283
    %v285 = vpop.f32.mrf.mxu0
    %v286 = vadd.f32 %v166, %v285
    %v287 = vpop.f32.mrf.mxu0
    %v288 = vpop.f32.mrf.mxu0
    %289 = vdwg.mxu0
    %vm290 = vcmp.gt.f32.partialorder %v284, 0.0
    %vm291 = vcmp.gt.f32.partialorder %v286, 0.0
    %v292 = vmul.f32 %v284, 0.01
    %v293 = vmul.f32 %v286, 0.01
    %v294 = vsel %vm290, %v284, %v292
    %v295 = vsel %vm291, %v286, %v293
    %v296 = vpack.c.bf16 %v294, %v294
    %v297 = vpack.c.bf16 %v295, %v295
    %v298 = vld [vmem:[#allocation7] sm:$0xff]
    %v299 = vld [vmem:[#allocation7 + $0x8] sm:$0xff]
    %v300 = vld [vmem:[#allocation7 + $0x10] sm:$0xff]
    %v301 = vld [vmem:[#allocation7 + $0x18] sm:$0xff]
    %v302 = vld [vmem:[#allocation7 + $0x20] sm:$0xf]
    %v303 = vld [vmem:[#allocation7 + $0x24] sm:$0xff]
    %v304 = vld [vmem:[#allocation7 + $0x2c] sm:$0xff]
    %v305 = vld [vmem:[#allocation7 + $0x34] sm:$0xff]
    %v306 = vld [vmem:[#allocation7 + $0x3c] sm:$0xff]
    %v307 = vld [vmem:[#allocation7 + $0x44] sm:$0xf]
    %v308 = vld [vmem:[#allocation7 + $0x48] sm:$0xff]
    %v309 = vld [vmem:[#allocation7 + $0x50] sm:$0xff]
    %v310 = vld [vmem:[#allocation7 + $0x58] sm:$0xff]
    %v311 = vld [vmem:[#allocation7 + $0x60] sm:$0xff]
    %v312 = vld [vmem:[#allocation7 + $0x68] sm:$0xf]
    %v313 = vld [vmem:[#allocation7 + $0x6c] sm:$0xff]
    %v314 = vld [vmem:[#allocation7 + $0x74] sm:$0xff]
    %v315 = vld [vmem:[#allocation7 + $0x7c] sm:$0xff]
    %v316 = vld [vmem:[#allocation7 + $0x84] sm:$0xff]
    %v317 = vld [vmem:[#allocation7 + $0x8c] sm:$0xf]
    %v318 = vld [vmem:[#allocation7 + $0x90] sm:$0xff]
    %v319 = vld [vmem:[#allocation7 + $0x98] sm:$0xff]
    %v320 = vld [vmem:[#allocation7 + $0xa0] sm:$0xff]
    %v321 = vld [vmem:[#allocation7 + $0xa8] sm:$0xff]
    %v322 = vld [vmem:[#allocation7 + $0xb0] sm:$0xf]
    %v323 = vld [vmem:[#allocation7 + $0xb4] sm:$0xff]
    %v324 = vld [vmem:[#allocation7 + $0xbc] sm:$0xff]
    %v325 = vld [vmem:[#allocation7 + $0xc4] sm:$0xff]
    %v326 = vld [vmem:[#allocation7 + $0xcc] sm:$0xff]
    %v327 = vld [vmem:[#allocation7 + $0xd4] sm:$0xf]
    %v328 = vld [vmem:[#allocation7 + $0xd8] sm:$0xff]
    %v329 = vld [vmem:[#allocation7 + $0xe0] sm:$0xff]
    %v330 = vld [vmem:[#allocation7 + $0xe8] sm:$0xff]
    %v331 = vld [vmem:[#allocation7 + $0xf0] sm:$0xff]
    %v332 = vld [vmem:[#allocation7 + $0xf8] sm:$0xf]
    %v333 = vld [vmem:[#allocation7 + $0xfc] sm:$0xff]
    %v334 = vld [vmem:[#allocation7 + $0x104] sm:$0xff]
    %v335 = vld [vmem:[#allocation7 + $0x10c] sm:$0xff]
    %v336 = vld [vmem:[#allocation7 + $0x114] sm:$0xff]
    %v337 = vld [vmem:[#allocation7 + $0x11c] sm:$0xf]
    %v338 = vld [vmem:[#allocation7 + $0x120] sm:$0xff]
    %v339 = vld [vmem:[#allocation7 + $0x128] sm:$0xff]
    %v340 = vld [vmem:[#allocation7 + $0x130] sm:$0xff]
    %v341 = vld [vmem:[#allocation7 + $0x138] sm:$0xff]
    %v342 = vld [vmem:[#allocation7 + $0x140] sm:$0xf]
    %v343 = vld [vmem:[#allocation7 + $0x144] sm:$0xff]
    %v344 = vld [vmem:[#allocation7 + $0x14c] sm:$0xff]
    %v345 = vld [vmem:[#allocation7 + $0x154] sm:$0xff]
    %v346 = vld [vmem:[#allocation7 + $0x15c] sm:$0xff]
    %v347 = vld [vmem:[#allocation7 + $0x164] sm:$0xf]
    %v348 = vld [vmem:[#allocation7 + $0x168] sm:$0xff]
    %v349 = vld [vmem:[#allocation7 + $0x170] sm:$0xff]
    %v350 = vld [vmem:[#allocation7 + $0x178] sm:$0xff]
    %v351 = vld [vmem:[#allocation7 + $0x180] sm:$0xff]
    %v352 = vld [vmem:[#allocation7 + $0x188] sm:$0xf]
    %v353 = vld [vmem:[#allocation7 + $0x18c] sm:$0xff]
    %v354 = vld [vmem:[#allocation7 + $0x194] sm:$0xff]
    %v355 = vld [vmem:[#allocation7 + $0x19c] sm:$0xff]
    %v356 = vld [vmem:[#allocation7 + $0x1a4] sm:$0xff]
    %v357 = vld [vmem:[#allocation7 + $0x1ac] sm:$0xf]
    %v358 = vld [vmem:[#allocation7 + $0x1b0] sm:$0xff]
    %v359 = vld [vmem:[#allocation7 + $0x1b8] sm:$0xff]
    %v360 = vld [vmem:[#allocation7 + $0x1c0] sm:$0xff]
    %v361 = vld [vmem:[#allocation7 + $0x1c8] sm:$0xff]
    %v362 = vld [vmem:[#allocation7 + $0x1d0] sm:$0xf]
    %v363 = vld [vmem:[#allocation7 + $0x1d4] sm:$0xff]
    %v364 = vld [vmem:[#allocation7 + $0x1dc] sm:$0xff]
    %v365 = vld [vmem:[#allocation7 + $0x1e4] sm:$0xff]
    %v366 = vld [vmem:[#allocation7 + $0x1ec] sm:$0xff]
    %v367 = vld [vmem:[#allocation7 + $0x1f4] sm:$0xf]
    %v368 = vld [vmem:[#allocation7 + $0x1f8] sm:$0xff]
    %v369 = vld [vmem:[#allocation7 + $0x200] sm:$0xff]
    %v370 = vld [vmem:[#allocation7 + $0x208] sm:$0xff]
    %v371 = vld [vmem:[#allocation7 + $0x210] sm:$0xff]
    %v372 = vld [vmem:[#allocation7 + $0x218] sm:$0xf]
    %v373 = vld [vmem:[#allocation7 + $0x21c] sm:$0xff]
    %v374 = vld [vmem:[#allocation7 + $0x224] sm:$0xff]
    %v375 = vld [vmem:[#allocation7 + $0x22c] sm:$0xff]
    %v376 = vld [vmem:[#allocation7 + $0x234] sm:$0xff]
    %v377 = vld [vmem:[#allocation7 + $0x23c] sm:$0xf]
    %v378 = vld [vmem:[#allocation7 + $0x240] sm:$0xff]
    %v379 = vld [vmem:[#allocation7 + $0x248] sm:$0xff]
    %v380 = vld [vmem:[#allocation7 + $0x250] sm:$0xff]
    %v381 = vld [vmem:[#allocation7 + $0x258] sm:$0xff]
    %v382 = vld [vmem:[#allocation7 + $0x260] sm:$0xf]
    %v383 = vld [vmem:[#allocation7 + $0x264] sm:$0xff]
    %v384 = vld [vmem:[#allocation7 + $0x26c] sm:$0xff]
    %v385 = vld [vmem:[#allocation7 + $0x274] sm:$0xff]
    %v386 = vld [vmem:[#allocation7 + $0x27c] sm:$0xff]
    %v387 = vld [vmem:[#allocation7 + $0x284] sm:$0xf]
    %v388 = vld [vmem:[#allocation7 + $0x288] sm:$0xff]
    %v389 = vld [vmem:[#allocation7 + $0x290] sm:$0xff]
    %v390 = vld [vmem:[#allocation7 + $0x298] sm:$0xff]
    %v391 = vld [vmem:[#allocation7 + $0x2a0] sm:$0xff]
    %v392 = vld [vmem:[#allocation7 + $0x2a8] sm:$0xf]
    %v393 = vld [vmem:[#allocation7 + $0x2ac] sm:$0xff]
    %v394 = vld [vmem:[#allocation7 + $0x2b4] sm:$0xff]
    %v395 = vld [vmem:[#allocation7 + $0x2bc] sm:$0xff]
    %v396 = vld [vmem:[#allocation7 + $0x2c4] sm:$0xff]
    %v397 = vld [vmem:[#allocation7 + $0x2cc] sm:$0xf]
    %v398 = vld [vmem:[#allocation7 + $0x2d0] sm:$0xff]
    %v399 = vld [vmem:[#allocation7 + $0x2d8] sm:$0xff]
    %v400 = vld [vmem:[#allocation7 + $0x2e0] sm:$0xff]
    %v401 = vld [vmem:[#allocation7 + $0x2e8] sm:$0xff]
    %v402 = vld [vmem:[#allocation7 + $0x2f0] sm:$0xf]
    %v403 = vld [vmem:[#allocation7 + $0x2f4] sm:$0xff]
    %v404 = vld [vmem:[#allocation7 + $0x2fc] sm:$0xff]
    %v405 = vld [vmem:[#allocation7 + $0x304] sm:$0xff]
    %v406 = vld [vmem:[#allocation7 + $0x30c] sm:$0xff]
    %v407 = vld [vmem:[#allocation7 + $0x314] sm:$0xf]
    %v408 = vld [vmem:[#allocation7 + $0x318] sm:$0xff]
    %v409 = vld [vmem:[#allocation7 + $0x320] sm:$0xff]
    %v410 = vld [vmem:[#allocation7 + $0x328] sm:$0xff]
    %v411 = vld [vmem:[#allocation7 + $0x330] sm:$0xff]
    %v412 = vld [vmem:[#allocation7 + $0x338] sm:$0xf]
    %v413 = vld [vmem:[#allocation7 + $0x33c] sm:$0xff]
    %v414 = vld [vmem:[#allocation7 + $0x344] sm:$0xff]
    %v415 = vld [vmem:[#allocation7 + $0x34c] sm:$0xff]
    %v416 = vld [vmem:[#allocation7 + $0x354] sm:$0xff]
    %v417 = vld [vmem:[#allocation7 + $0x35c] sm:$0xf]
    %v418 = vld [vmem:[#allocation7 + $0x360] sm:$0xff]
    %v419 = vld [vmem:[#allocation7 + $0x368] sm:$0xff]
    %v420 = vld [vmem:[#allocation7 + $0x370] sm:$0xff]
    %v421 = vld [vmem:[#allocation7 + $0x378] sm:$0xff]
    %v422 = vld [vmem:[#allocation7 + $0x380] sm:$0xf]
    %v423 = vld [vmem:[#allocation7 + $0x384] sm:$0xff]
    %v424 = vld [vmem:[#allocation7 + $0x38c] sm:$0xff]
    %v425 = vld [vmem:[#allocation7 + $0x394] sm:$0xff]
    %v426 = vld [vmem:[#allocation7 + $0x39c] sm:$0xff]
    %v427 = vld [vmem:[#allocation7 + $0x3a4] sm:$0xf]
    %v428 = vld [vmem:[#allocation7 + $0x3a8] sm:$0xff]
    %v429 = vld [vmem:[#allocation7 + $0x3b0] sm:$0xff]
    %v430 = vld [vmem:[#allocation7 + $0x3b8] sm:$0xff]
    %v431 = vld [vmem:[#allocation7 + $0x3c0] sm:$0xff]
    %v432 = vld [vmem:[#allocation7 + $0x3c8] sm:$0xf]
    %v433 = vld [vmem:[#allocation7 + $0x3cc] sm:$0xff]
    %v434 = vld [vmem:[#allocation7 + $0x3d4] sm:$0xff]
    %v435 = vld [vmem:[#allocation7 + $0x3dc] sm:$0xff]
    %v436 = vld [vmem:[#allocation7 + $0x3e4] sm:$0xff]
    %v437 = vld [vmem:[#allocation7 + $0x3ec] sm:$0xf]
    %v438 = vld [vmem:[#allocation7 + $0x3f0] sm:$0xff]
    %v439 = vld [vmem:[#allocation7 + $0x3f8] sm:$0xff]
    %v440 = vld [vmem:[#allocation7 + $0x400] sm:$0xff]
    %v441 = vld [vmem:[#allocation7 + $0x408] sm:$0xff]
    %v442 = vld [vmem:[#allocation7 + $0x410] sm:$0xf]
    %v443 = vld [vmem:[#allocation7 + $0x414] sm:$0xff]
    %v444 = vld [vmem:[#allocation7 + $0x41c] sm:$0xff]
    %v445 = vld [vmem:[#allocation7 + $0x424] sm:$0xff]
    %v446 = vld [vmem:[#allocation7 + $0x42c] sm:$0xff]
    %v447 = vld [vmem:[#allocation7 + $0x434] sm:$0xf]
    %v448 = vld [vmem:[#allocation7 + $0x438] sm:$0xff]
    %v449 = vld [vmem:[#allocation7 + $0x440] sm:$0xff]
    %v450 = vld [vmem:[#allocation7 + $0x448] sm:$0xff]
    %v451 = vld [vmem:[#allocation7 + $0x450] sm:$0xff]
    %v452 = vld [vmem:[#allocation7 + $0x458] sm:$0xf]
    %v453 = vld [vmem:[#allocation7 + $0x45c] sm:$0xff]
    %v454 = vld [vmem:[#allocation7 + $0x464] sm:$0xff]
    %v455 = vld [vmem:[#allocation7 + $0x46c] sm:$0xff]
    %v456 = vld [vmem:[#allocation7 + $0x474] sm:$0xff]
    %v457 = vld [vmem:[#allocation7 + $0x47c] sm:$0xf]
    %v458 = vld [vmem:[%s6] sm:$0xff]
    %v459 = vld [vmem:[%s6 + $0x8] sm:$0x1]
    %v462 = vlaneseq
    %v463 = vshrl.u32 %v462, 7
    %v464 = vsub.s32 0, %v463
    %v465 = vrot.slane %v458, %v464
    %v466 = vlaneseq
    %v467 = vshrl.u32 %v466, 7
    %v468 = vsub.s32 1, %v467
    %v469 = vrot.slane %v458, %v468
    %v470 = vlaneseq
    %v471 = vshrl.u32 %v470, 7
    %v472 = vsub.s32 2, %v471
    %v473 = vrot.slane %v458, %v472
    %v474 = vlaneseq
    %v475 = vshrl.u32 %v474, 7
    %v476 = vsub.s32 3, %v475
    %v477 = vrot.slane %v458, %v476
    %v478 = vlaneseq
    %v479 = vshrl.u32 %v478, 7
    %v480 = vsub.s32 4, %v479
    %v481 = vrot.slane %v458, %v480
    %v482 = vlaneseq
    %v483 = vshrl.u32 %v482, 7
    %v484 = vsub.s32 5, %v483
    %v485 = vrot.slane %v458, %v484
    %v486 = vlaneseq
    %v487 = vshrl.u32 %v486, 7
    %v488 = vsub.s32 6, %v487
    %v489 = vrot.slane %v458, %v488
    %v490 = vlaneseq
    %v491 = vshrl.u32 %v490, 7
    %v492 = vsub.s32 7, %v491
    %v493 = vrot.slane %v458, %v492
    %v494 = vlaneseq
    %v495 = vshrl.u32 %v494, 7
    %v496 = vsub.s32 0, %v495
    %v497 = vrot.slane %v459, %v496
    %v667 = vunpack.c.l.b16 %v298
    %v668 = vunpack.c.h.b16 %v298
    %v669 = vunpack.c.l.b16 %v299
    %v670 = vunpack.c.h.b16 %v299
    %v671 = vunpack.c.l.b16 %v300
    %v672 = vunpack.c.h.b16 %v300
    %v673 = vunpack.c.l.b16 %v301
    %v674 = vunpack.c.h.b16 %v301
    %v675 = vunpack.c.l.b16 %v302
    %v676 = vunpack.c.l.b16 %v303
    %v677 = vunpack.c.h.b16 %v303
    %v678 = vunpack.c.l.b16 %v304
    %v679 = vunpack.c.h.b16 %v304
    %v680 = vunpack.c.l.b16 %v305
    %v681 = vunpack.c.h.b16 %v305
    %v682 = vunpack.c.l.b16 %v306
    %v683 = vunpack.c.h.b16 %v306
    %v684 = vunpack.c.l.b16 %v307
    %v685 = vunpack.c.l.b16 %v308
    %v686 = vunpack.c.h.b16 %v308
    %v687 = vunpack.c.l.b16 %v309
    %v688 = vunpack.c.h.b16 %v309
    %v689 = vunpack.c.l.b16 %v310
    %v690 = vunpack.c.h.b16 %v310
    %v691 = vunpack.c.l.b16 %v311
    %v692 = vunpack.c.h.b16 %v311
    %v693 = vunpack.c.l.b16 %v312
    %v694 = vunpack.c.l.b16 %v313
    %v695 = vunpack.c.h.b16 %v313
    %v696 = vunpack.c.l.b16 %v314
    %v697 = vunpack.c.h.b16 %v314
    %v698 = vunpack.c.l.b16 %v315
    %v699 = vunpack.c.h.b16 %v315
    %v700 = vunpack.c.l.b16 %v316
    %v701 = vunpack.c.h.b16 %v316
    %v702 = vunpack.c.l.b16 %v317
    %v703 = vunpack.c.l.b16 %v318
    %v704 = vunpack.c.h.b16 %v318
    %v705 = vunpack.c.l.b16 %v319
    %v706 = vunpack.c.h.b16 %v319
    %v707 = vunpack.c.l.b16 %v320
    %v708 = vunpack.c.h.b16 %v320
    %v709 = vunpack.c.l.b16 %v321
    %v710 = vunpack.c.h.b16 %v321
    %v711 = vunpack.c.l.b16 %v322
    %v712 = vunpack.c.l.b16 %v323
    %v713 = vunpack.c.h.b16 %v323
    %v714 = vunpack.c.l.b16 %v324
    %v715 = vunpack.c.h.b16 %v324
    %v716 = vunpack.c.l.b16 %v325
    %v717 = vunpack.c.h.b16 %v325
    %v718 = vunpack.c.l.b16 %v326
    %v719 = vunpack.c.h.b16 %v326
    %v720 = vunpack.c.l.b16 %v327
    %v721 = vunpack.c.l.b16 %v328
    %v722 = vunpack.c.h.b16 %v328
    %v723 = vunpack.c.l.b16 %v329
    %v724 = vunpack.c.h.b16 %v329
    %v725 = vunpack.c.l.b16 %v330
    %v726 = vunpack.c.h.b16 %v330
    %v727 = vunpack.c.l.b16 %v331
    %v728 = vunpack.c.h.b16 %v331
    %v729 = vunpack.c.l.b16 %v332
    %v730 = vunpack.c.l.b16 %v333
    %v731 = vunpack.c.h.b16 %v333
    %v732 = vunpack.c.l.b16 %v334
    %v733 = vunpack.c.h.b16 %v334
    %v734 = vunpack.c.l.b16 %v335
    %v735 = vunpack.c.h.b16 %v335
    %v736 = vunpack.c.l.b16 %v336
    %v737 = vunpack.c.h.b16 %v336
    %v738 = vunpack.c.l.b16 %v337
    %v739 = vunpack.c.l.b16 %v338
    %v740 = vunpack.c.h.b16 %v338
    %v741 = vunpack.c.l.b16 %v339
    %v742 = vunpack.c.h.b16 %v339
    %v743 = vunpack.c.l.b16 %v340
    %v744 = vunpack.c.h.b16 %v340
    %v745 = vunpack.c.l.b16 %v341
    %v746 = vunpack.c.h.b16 %v341
    %v747 = vunpack.c.l.b16 %v342
    %v748 = vunpack.c.l.b16 %v343
    %v749 = vunpack.c.h.b16 %v343
    %v750 = vunpack.c.l.b16 %v344
    %v751 = vunpack.c.h.b16 %v344
    %v752 = vunpack.c.l.b16 %v345
    %v753 = vunpack.c.h.b16 %v345
    %v754 = vunpack.c.l.b16 %v346
    %v755 = vunpack.c.h.b16 %v346
    %v756 = vunpack.c.l.b16 %v347
    %v757 = vunpack.c.l.b16 %v348
    %v758 = vunpack.c.h.b16 %v348
    %v759 = vunpack.c.l.b16 %v349
    %v760 = vunpack.c.h.b16 %v349
    %v761 = vunpack.c.l.b16 %v350
    %v762 = vunpack.c.h.b16 %v350
    %v763 = vunpack.c.l.b16 %v351
    %v764 = vunpack.c.h.b16 %v351
    %v765 = vunpack.c.l.b16 %v352
    %v766 = vunpack.c.l.b16 %v353
    %v767 = vunpack.c.h.b16 %v353
    %v768 = vunpack.c.l.b16 %v354
    %v769 = vunpack.c.h.b16 %v354
    %v770 = vunpack.c.l.b16 %v355
    %v771 = vunpack.c.h.b16 %v355
    %v772 = vunpack.c.l.b16 %v356
    %v773 = vunpack.c.h.b16 %v356
    %v774 = vunpack.c.l.b16 %v357
    %v775 = vunpack.c.l.b16 %v358
    %v776 = vunpack.c.h.b16 %v358
    %v777 = vunpack.c.l.b16 %v359
    %v778 = vunpack.c.h.b16 %v359
    %v779 = vunpack.c.l.b16 %v360
    %v780 = vunpack.c.h.b16 %v360
    %v781 = vunpack.c.l.b16 %v361
    %v782 = vunpack.c.h.b16 %v361
    %v783 = vunpack.c.l.b16 %v362
    %v784 = vunpack.c.l.b16 %v363
    %v785 = vunpack.c.h.b16 %v363
    %v786 = vunpack.c.l.b16 %v364
    %v787 = vunpack.c.h.b16 %v364
    %v788 = vunpack.c.l.b16 %v365
    %v789 = vunpack.c.h.b16 %v365
    %v790 = vunpack.c.l.b16 %v366
    %v791 = vunpack.c.h.b16 %v366
    %v792 = vunpack.c.l.b16 %v367
    %v793 = vunpack.c.l.b16 %v368
    %v794 = vunpack.c.h.b16 %v368
    %v795 = vunpack.c.l.b16 %v369
    %v796 = vunpack.c.h.b16 %v369
    %v797 = vunpack.c.l.b16 %v370
    %v798 = vunpack.c.h.b16 %v370
    %v799 = vunpack.c.l.b16 %v371
    %v800 = vunpack.c.h.b16 %v371
    %v801 = vunpack.c.l.b16 %v372
    %v802 = vunpack.c.l.b16 %v373
    %v803 = vunpack.c.h.b16 %v373
    %v804 = vunpack.c.l.b16 %v374
    %v805 = vunpack.c.h.b16 %v374
    %v806 = vunpack.c.l.b16 %v375
    %v807 = vunpack.c.h.b16 %v375
    %v808 = vunpack.c.l.b16 %v376
    %v809 = vunpack.c.h.b16 %v376
    %v810 = vunpack.c.l.b16 %v377
    %v811 = vunpack.c.l.b16 %v378
    %v812 = vunpack.c.h.b16 %v378
    %v813 = vunpack.c.l.b16 %v379
    %v814 = vunpack.c.h.b16 %v379
    %v815 = vunpack.c.l.b16 %v380
    %v816 = vunpack.c.h.b16 %v380
    %v817 = vunpack.c.l.b16 %v381
    %v818 = vunpack.c.h.b16 %v381
    %v819 = vunpack.c.l.b16 %v382
    %v820 = vunpack.c.l.b16 %v383
    %v821 = vunpack.c.h.b16 %v383
    %v822 = vunpack.c.l.b16 %v384
    %v823 = vunpack.c.h.b16 %v384
    %v824 = vunpack.c.l.b16 %v385
    %v825 = vunpack.c.h.b16 %v385
    %v826 = vunpack.c.l.b16 %v386
    %v827 = vunpack.c.h.b16 %v386
    %v828 = vunpack.c.l.b16 %v387
    %v829 = vunpack.c.l.b16 %v388
    %v830 = vunpack.c.h.b16 %v388
    %v831 = vunpack.c.l.b16 %v389
    %v832 = vunpack.c.h.b16 %v389
    %v833 = vunpack.c.l.b16 %v390
    %v834 = vunpack.c.h.b16 %v390
    %v835 = vunpack.c.l.b16 %v391
    %v836 = vunpack.c.h.b16 %v391
    %v837 = vunpack.c.l.b16 %v392
    %v838 = vunpack.c.l.b16 %v393
    %v839 = vunpack.c.h.b16 %v393
    %v840 = vunpack.c.l.b16 %v394
    %v841 = vunpack.c.h.b16 %v394
    %v842 = vunpack.c.l.b16 %v395
    %v843 = vunpack.c.h.b16 %v395
    %v844 = vunpack.c.l.b16 %v396
    %v845 = vunpack.c.h.b16 %v396
    %v846 = vunpack.c.l.b16 %v397
    %v847 = vunpack.c.l.b16 %v398
    %v848 = vunpack.c.h.b16 %v398
    %v849 = vunpack.c.l.b16 %v399
    %v850 = vunpack.c.h.b16 %v399
    %v851 = vunpack.c.l.b16 %v400
    %v852 = vunpack.c.h.b16 %v400
    %v853 = vunpack.c.l.b16 %v401
    %v854 = vunpack.c.h.b16 %v401
    %v855 = vunpack.c.l.b16 %v402
    %v856 = vunpack.c.l.b16 %v403
    %v857 = vunpack.c.h.b16 %v403
    %v858 = vunpack.c.l.b16 %v404
    %v859 = vunpack.c.h.b16 %v404
    %v860 = vunpack.c.l.b16 %v405
    %v861 = vunpack.c.h.b16 %v405
    %v862 = vunpack.c.l.b16 %v406
    %v863 = vunpack.c.h.b16 %v406
    %v864 = vunpack.c.l.b16 %v407
    %v865 = vunpack.c.l.b16 %v408
    %v866 = vunpack.c.h.b16 %v408
    %v867 = vunpack.c.l.b16 %v409
    %v868 = vunpack.c.h.b16 %v409
    %v869 = vunpack.c.l.b16 %v410
    %v870 = vunpack.c.h.b16 %v410
    %v871 = vunpack.c.l.b16 %v411
    %v872 = vunpack.c.h.b16 %v411
    %v873 = vunpack.c.l.b16 %v412
    %v874 = vunpack.c.l.b16 %v413
    %v875 = vunpack.c.h.b16 %v413
    %v876 = vunpack.c.l.b16 %v414
    %v877 = vunpack.c.h.b16 %v414
    %v878 = vunpack.c.l.b16 %v415
    %v879 = vunpack.c.h.b16 %v415
    %v880 = vunpack.c.l.b16 %v416
    %v881 = vunpack.c.h.b16 %v416
    %v882 = vunpack.c.l.b16 %v417
    %v883 = vunpack.c.l.b16 %v418
    %v884 = vunpack.c.h.b16 %v418
    %v885 = vunpack.c.l.b16 %v419
    %v886 = vunpack.c.h.b16 %v419
    %v887 = vunpack.c.l.b16 %v420
    %v888 = vunpack.c.h.b16 %v420
    %v889 = vunpack.c.l.b16 %v421
    %v890 = vunpack.c.h.b16 %v421
    %v891 = vunpack.c.l.b16 %v422
    %v892 = vunpack.c.l.b16 %v423
    %v893 = vunpack.c.h.b16 %v423
    %v894 = vunpack.c.l.b16 %v424
    %v895 = vunpack.c.h.b16 %v424
    %v896 = vunpack.c.l.b16 %v425
    %v897 = vunpack.c.h.b16 %v425
    %v898 = vunpack.c.l.b16 %v426
    %v899 = vunpack.c.h.b16 %v426
    %v900 = vunpack.c.l.b16 %v427
    %v901 = vunpack.c.l.b16 %v428
    %v902 = vunpack.c.h.b16 %v428
    %v903 = vunpack.c.l.b16 %v429
    %v904 = vunpack.c.h.b16 %v429
    %v905 = vunpack.c.l.b16 %v430
    %v906 = vunpack.c.h.b16 %v430
    %v907 = vunpack.c.l.b16 %v431
    %v908 = vunpack.c.h.b16 %v431
    %v909 = vunpack.c.l.b16 %v432
    %v910 = vunpack.c.l.b16 %v433
    %v911 = vunpack.c.h.b16 %v433
    %v912 = vunpack.c.l.b16 %v434
    %v913 = vunpack.c.h.b16 %v434
    %v914 = vunpack.c.l.b16 %v435
    %v915 = vunpack.c.h.b16 %v435
    %v916 = vunpack.c.l.b16 %v436
    %v917 = vunpack.c.h.b16 %v436
    %v918 = vunpack.c.l.b16 %v437
    %v919 = vunpack.c.l.b16 %v438
    %v920 = vunpack.c.h.b16 %v438
    %v921 = vunpack.c.l.b16 %v439
    %v922 = vunpack.c.h.b16 %v439
    %v923 = vunpack.c.l.b16 %v440
    %v924 = vunpack.c.h.b16 %v440
    %v925 = vunpack.c.l.b16 %v441
    %v926 = vunpack.c.h.b16 %v441
    %v927 = vunpack.c.l.b16 %v442
    %v928 = vunpack.c.l.b16 %v443
    %v929 = vunpack.c.h.b16 %v443
    %v930 = vunpack.c.l.b16 %v444
    %v931 = vunpack.c.h.b16 %v444
    %v932 = vunpack.c.l.b16 %v445
    %v933 = vunpack.c.h.b16 %v445
    %v934 = vunpack.c.l.b16 %v446
    %v935 = vunpack.c.h.b16 %v446
    %v936 = vunpack.c.l.b16 %v447
    %v937 = vunpack.c.l.b16 %v448
    %v938 = vunpack.c.h.b16 %v448
    %v939 = vunpack.c.l.b16 %v449
    %v940 = vunpack.c.h.b16 %v449
    %v941 = vunpack.c.l.b16 %v450
    %v942 = vunpack.c.h.b16 %v450
    %v943 = vunpack.c.l.b16 %v451
    %v944 = vunpack.c.h.b16 %v451
    %v945 = vunpack.c.l.b16 %v452
    %v946 = vunpack.c.l.b16 %v453
    %v947 = vunpack.c.h.b16 %v453
    %v948 = vunpack.c.l.b16 %v454
    %v949 = vunpack.c.h.b16 %v454
    %v950 = vunpack.c.l.b16 %v455
    %v951 = vunpack.c.h.b16 %v455
    %v952 = vunpack.c.l.b16 %v456
    %v953 = vunpack.c.h.b16 %v456
    %v954 = vunpack.c.l.b16 %v457
    %v955 = vpack.c.b16 %v676, %v667
    %v956 = vpack.c.b16 %v677, %v668
    %v957 = vpack.c.b16 %v678, %v669
    %v958 = vpack.c.b16 %v679, %v670
    %v959 = vpack.c.b16 %v680, %v671
    %v960 = vpack.c.b16 %v681, %v672
    %v961 = vpack.c.b16 %v682, %v673
    %v962 = vpack.c.b16 %v683, %v674
    %v963 = vpack.c.b16 %v684, %v675
    %v964 = vpack.c.b16 %v694, %v685
    %v965 = vpack.c.b16 %v695, %v686
    %v966 = vpack.c.b16 %v696, %v687
    %v967 = vpack.c.b16 %v697, %v688
    %v968 = vpack.c.b16 %v698, %v689
    %v969 = vpack.c.b16 %v699, %v690
    %v970 = vpack.c.b16 %v700, %v691
    %v971 = vpack.c.b16 %v701, %v692
    %v972 = vpack.c.b16 %v702, %v693
    %v973 = vpack.c.b16 %v712, %v703
    %v974 = vpack.c.b16 %v713, %v704
    %v975 = vpack.c.b16 %v714, %v705
    %v976 = vpack.c.b16 %v715, %v706
    %v977 = vpack.c.b16 %v716, %v707
    %v978 = vpack.c.b16 %v717, %v708
    %v979 = vpack.c.b16 %v718, %v709
    %v980 = vpack.c.b16 %v719, %v710
    %v981 = vpack.c.b16 %v720, %v711
    %v982 = vpack.c.b16 %v730, %v721
    %v983 = vpack.c.b16 %v731, %v722
    %v984 = vpack.c.b16 %v732, %v723
    %v985 = vpack.c.b16 %v733, %v724
    %v986 = vpack.c.b16 %v734, %v725
    %v987 = vpack.c.b16 %v735, %v726
    %v988 = vpack.c.b16 %v736, %v727
    %v989 = vpack.c.b16 %v737, %v728
    %v990 = vpack.c.b16 %v738, %v729
    %v991 = vpack.c.b16 %v748, %v739
    %v992 = vpack.c.b16 %v749, %v740
    %v993 = vpack.c.b16 %v750, %v741
    %v994 = vpack.c.b16 %v751, %v742
    %v995 = vpack.c.b16 %v752, %v743
    %v996 = vpack.c.b16 %v753, %v744
    %v997 = vpack.c.b16 %v754, %v745
    %v998 = vpack.c.b16 %v755, %v746
    %v999 = vpack.c.b16 %v756, %v747
    %v1000 = vpack.c.b16 %v766, %v757
    %v1001 = vpack.c.b16 %v767, %v758
    %v1002 = vpack.c.b16 %v768, %v759
    %v1003 = vpack.c.b16 %v769, %v760
    %v1004 = vpack.c.b16 %v770, %v761
    %v1005 = vpack.c.b16 %v771, %v762
    %v1006 = vpack.c.b16 %v772, %v763
    %v1007 = vpack.c.b16 %v773, %v764
    %v1008 = vpack.c.b16 %v774, %v765
    %v1009 = vpack.c.b16 %v784, %v775
    %v1010 = vpack.c.b16 %v785, %v776
    %v1011 = vpack.c.b16 %v786, %v777
    %v1012 = vpack.c.b16 %v787, %v778
    %v1013 = vpack.c.b16 %v788, %v779
    %v1014 = vpack.c.b16 %v789, %v780
    %v1015 = vpack.c.b16 %v790, %v781
    %v1016 = vpack.c.b16 %v791, %v782
    %v1017 = vpack.c.b16 %v792, %v783
    %v1018 = vpack.c.b16 %v802, %v793
    %v1019 = vpack.c.b16 %v803, %v794
    %v1020 = vpack.c.b16 %v804, %v795
    %v1021 = vpack.c.b16 %v805, %v796
    %v1022 = vpack.c.b16 %v806, %v797
    %v1023 = vpack.c.b16 %v807, %v798
    %v1024 = vpack.c.b16 %v808, %v799
    %v1025 = vpack.c.b16 %v809, %v800
    %v1026 = vpack.c.b16 %v810, %v801
    %v1027 = vpack.c.b16 %v820, %v811
    %v1028 = vpack.c.b16 %v821, %v812
    %v1029 = vpack.c.b16 %v822, %v813
    %v1030 = vpack.c.b16 %v823, %v814
    %v1031 = vpack.c.b16 %v824, %v815
    %v1032 = vpack.c.b16 %v825, %v816
    %v1033 = vpack.c.b16 %v826, %v817
    %v1034 = vpack.c.b16 %v827, %v818
    %v1035 = vpack.c.b16 %v828, %v819
    %v1036 = vpack.c.b16 %v838, %v829
    %v1037 = vpack.c.b16 %v839, %v830
    %v1038 = vpack.c.b16 %v840, %v831
    %v1039 = vpack.c.b16 %v841, %v832
    %v1040 = vpack.c.b16 %v842, %v833
    %v1041 = vpack.c.b16 %v843, %v834
    %v1042 = vpack.c.b16 %v844, %v835
    %v1043 = vpack.c.b16 %v845, %v836
    %v1044 = vpack.c.b16 %v846, %v837
    %v1045 = vpack.c.b16 %v856, %v847
    %v1046 = vpack.c.b16 %v857, %v848
    %v1047 = vpack.c.b16 %v858, %v849
    %v1048 = vpack.c.b16 %v859, %v850
    %v1049 = vpack.c.b16 %v860, %v851
    %v1050 = vpack.c.b16 %v861, %v852
    %v1051 = vpack.c.b16 %v862, %v853
    %v1052 = vpack.c.b16 %v863, %v854
    %v1053 = vpack.c.b16 %v864, %v855
    %v1054 = vpack.c.b16 %v874, %v865
    %v1055 = vpack.c.b16 %v875, %v866
    %v1056 = vpack.c.b16 %v876, %v867
    %v1057 = vpack.c.b16 %v877, %v868
    %v1058 = vpack.c.b16 %v878, %v869
    %v1059 = vpack.c.b16 %v879, %v870
    %v1060 = vpack.c.b16 %v880, %v871
    %v1061 = vpack.c.b16 %v881, %v872
    %v1062 = vpack.c.b16 %v882, %v873
    %v1063 = vpack.c.b16 %v892, %v883
    %v1064 = vpack.c.b16 %v893, %v884
    %v1065 = vpack.c.b16 %v894, %v885
    %v1066 = vpack.c.b16 %v895, %v886
    %v1067 = vpack.c.b16 %v896, %v887
    %v1068 = vpack.c.b16 %v897, %v888
    %v1069 = vpack.c.b16 %v898, %v889
    %v1070 = vpack.c.b16 %v899, %v890
    %v1071 = vpack.c.b16 %v900, %v891
    %v1072 = vpack.c.b16 %v910, %v901
    %v1073 = vpack.c.b16 %v911, %v902
    %v1074 = vpack.c.b16 %v912, %v903
    %v1075 = vpack.c.b16 %v913, %v904
    %v1076 = vpack.c.b16 %v914, %v905
    %v1077 = vpack.c.b16 %v915, %v906
    %v1078 = vpack.c.b16 %v916, %v907
    %v1079 = vpack.c.b16 %v917, %v908
    %v1080 = vpack.c.b16 %v918, %v909
    %v1081 = vpack.c.b16 %v928, %v919
    %v1082 = vpack.c.b16 %v929, %v920
    %v1083 = vpack.c.b16 %v930, %v921
    %v1084 = vpack.c.b16 %v931, %v922
    %v1085 = vpack.c.b16 %v932, %v923
    %v1086 = vpack.c.b16 %v933, %v924
    %v1087 = vpack.c.b16 %v934, %v925
    %v1088 = vpack.c.b16 %v935, %v926
    %v1089 = vpack.c.b16 %v936, %v927
    %v1090 = vpack.c.b16 %v946, %v937
    %v1091 = vpack.c.b16 %v947, %v938
    %v1092 = vpack.c.b16 %v948, %v939
    %v1093 = vpack.c.b16 %v949, %v940
    %v1094 = vpack.c.b16 %v950, %v941
    %v1095 = vpack.c.b16 %v951, %v942
    %v1096 = vpack.c.b16 %v952, %v943
    %v1097 = vpack.c.b16 %v953, %v944
    %v1098 = vpack.c.b16 %v954, %v945
    %1243 = vmatprep.subr.bf16.mxu0 %v1019
    %1244 = vmatpush1.bf16.msra.mxu0 %v1018
    %1245 = vmatprep.subr.bf16.mxu0 %v1010
    %1246 = vmatpush1.bf16.msra.mxu0 %v1009
    %1247 = vmatprep.subr.bf16.mxu0 %v1001
    %1248 = vmatpush1.bf16.msra.mxu0 %v1000
    %1249 = vmatprep.subr.bf16.mxu0 %v992
    %1250 = vmatpush1.bf16.msra.mxu0 %v991
    %1251 = vmatprep.subr.bf16.mxu0 %v983
    %1252 = vmatpush1.bf16.msra.mxu0 %v982
    %1253 = vmatprep.subr.bf16.mxu0 %v974
    %1254 = vmatpush1.bf16.msra.mxu0 %v973
    %1255 = vmatprep.subr.bf16.mxu0 %v965
    %1256 = vmatpush1.bf16.msra.mxu0 %v964
    %1257 = vmatprep.subr.bf16.mxu0 %v956
    %1258 = vmatpush1.bf16.msra.mxu0 %v955
    %1259 = vmatprep.subr.bf16.mxu0 %v1091
    %1260 = vmatpush2.bf16.msra.mxu0 %v1090
    %1261 = vmatprep.subr.bf16.mxu0 %v1082
    %1262 = vmatpush2.bf16.msra.mxu0 %v1081
    %1263 = vmatprep.subr.bf16.mxu0 %v1073
    %1264 = vmatpush2.bf16.msra.mxu0 %v1072
    %1265 = vmatprep.subr.bf16.mxu0 %v1064
    %1266 = vmatpush2.bf16.msra.mxu0 %v1063
    %1267 = vmatprep.subr.bf16.mxu0 %v1055
    %1268 = vmatpush2.bf16.msra.mxu0 %v1054
    %1269 = vmatprep.subr.bf16.mxu0 %v1046
    %1270 = vmatpush2.bf16.msra.mxu0 %v1045
    %1271 = vmatprep.subr.bf16.mxu0 %v1037
    %1272 = vmatpush2.bf16.msra.mxu0 %v1036
    %1273 = vmatprep.subr.bf16.mxu0 %v1028
    %1274 = vmatpush2.bf16.msra.mxu0 %v1027
    %1275 = vmatprep.mubr.bf16.mxu0 %v297
    %1276 = vmatmul.mubr.bf16.gmra.mxu0 %v296
    %v1277 = vpop.f32.mrf.mxu0
    %v1278 = vadd.f32 %v465, %v1277
    %v1279 = vpop.f32.mrf.mxu0
    %v1280 = vadd.f32 %v469, %v1279
    %v1281 = vpop.f32.mrf.mxu0
    %v1282 = vpop.f32.mrf.mxu0
    %1283 = vdwg.mxu0
    %1284 = vmatprep.subr.bf16.mxu0 %v1021
    %1285 = vmatpush1.bf16.msra.mxu0 %v1020
    %1286 = vmatprep.subr.bf16.mxu0 %v1012
    %1287 = vmatpush1.bf16.msra.mxu0 %v1011
    %1288 = vmatprep.subr.bf16.mxu0 %v1003
    %1289 = vmatpush1.bf16.msra.mxu0 %v1002
    %1290 = vmatprep.subr.bf16.mxu0 %v994
    %1291 = vmatpush1.bf16.msra.mxu0 %v993
    %1292 = vmatprep.subr.bf16.mxu0 %v985
    %1293 = vmatpush1.bf16.msra.mxu0 %v984
    %1294 = vmatprep.subr.bf16.mxu0 %v976
    %1295 = vmatpush1.bf16.msra.mxu0 %v975
    %1296 = vmatprep.subr.bf16.mxu0 %v967
    %1297 = vmatpush1.bf16.msra.mxu0 %v966
    %1298 = vmatprep.subr.bf16.mxu0 %v958
    %1299 = vmatpush1.bf16.msra.mxu0 %v957
    %1300 = vmatprep.subr.bf16.mxu0 %v1093
    %1301 = vmatpush2.bf16.msra.mxu0 %v1092
    %1302 = vmatprep.subr.bf16.mxu0 %v1084
    %1303 = vmatpush2.bf16.msra.mxu0 %v1083
    %1304 = vmatprep.subr.bf16.mxu0 %v1075
    %1305 = vmatpush2.bf16.msra.mxu0 %v1074
    %1306 = vmatprep.subr.bf16.mxu0 %v1066
    %1307 = vmatpush2.bf16.msra.mxu0 %v1065
    %1308 = vmatprep.subr.bf16.mxu0 %v1057
    %1309 = vmatpush2.bf16.msra.mxu0 %v1056
    %1310 = vmatprep.subr.bf16.mxu0 %v1048
    %1311 = vmatpush2.bf16.msra.mxu0 %v1047
    %1312 = vmatprep.subr.bf16.mxu0 %v1039
    %1313 = vmatpush2.bf16.msra.mxu0 %v1038
    %1314 = vmatprep.subr.bf16.mxu0 %v1030
    %1315 = vmatpush2.bf16.msra.mxu0 %v1029
    %1316 = vmatprep.mubr.bf16.mxu0 %v297
    %1317 = vmatmul.mubr.bf16.gmra.mxu0 %v296
    %v1318 = vpop.f32.mrf.mxu0
    %v1319 = vadd.f32 %v473, %v1318
    %v1320 = vpop.f32.mrf.mxu0
    %v1321 = vadd.f32 %v477, %v1320
    %v1322 = vpop.f32.mrf.mxu0
    %v1323 = vpop.f32.mrf.mxu0
    %1324 = vdwg.mxu0
    %1325 = vmatprep.subr.bf16.mxu0 %v1023
    %1326 = vmatpush1.bf16.msra.mxu0 %v1022
    %1327 = vmatprep.subr.bf16.mxu0 %v1014
    %1328 = vmatpush1.bf16.msra.mxu0 %v1013
    %1329 = vmatprep.subr.bf16.mxu0 %v1005
    %1330 = vmatpush1.bf16.msra.mxu0 %v1004
    %1331 = vmatprep.subr.bf16.mxu0 %v996
    %1332 = vmatpush1.bf16.msra.mxu0 %v995
    %1333 = vmatprep.subr.bf16.mxu0 %v987
    %1334 = vmatpush1.bf16.msra.mxu0 %v986
    %1335 = vmatprep.subr.bf16.mxu0 %v978
    %1336 = vmatpush1.bf16.msra.mxu0 %v977
    %1337 = vmatprep.subr.bf16.mxu0 %v969
    %1338 = vmatpush1.bf16.msra.mxu0 %v968
    %1339 = vmatprep.subr.bf16.mxu0 %v960
    %1340 = vmatpush1.bf16.msra.mxu0 %v959
    %1341 = vmatprep.subr.bf16.mxu0 %v1095
    %1342 = vmatpush2.bf16.msra.mxu0 %v1094
    %1343 = vmatprep.subr.bf16.mxu0 %v1086
    %1344 = vmatpush2.bf16.msra.mxu0 %v1085
    %1345 = vmatprep.subr.bf16.mxu0 %v1077
    %1346 = vmatpush2.bf16.msra.mxu0 %v1076
    %1347 = vmatprep.subr.bf16.mxu0 %v1068
    %1348 = vmatpush2.bf16.msra.mxu0 %v1067
    %1349 = vmatprep.subr.bf16.mxu0 %v1059
    %1350 = vmatpush2.bf16.msra.mxu0 %v1058
    %1351 = vmatprep.subr.bf16.mxu0 %v1050
    %1352 = vmatpush2.bf16.msra.mxu0 %v1049
    %1353 = vmatprep.subr.bf16.mxu0 %v1041
    %1354 = vmatpush2.bf16.msra.mxu0 %v1040
    %1355 = vmatprep.subr.bf16.mxu0 %v1032
    %1356 = vmatpush2.bf16.msra.mxu0 %v1031
    %1357 = vmatprep.mubr.bf16.mxu0 %v297
    %1358 = vmatmul.mubr.bf16.gmra.mxu0 %v296
    %v1359 = vpop.f32.mrf.mxu0
    %v1360 = vadd.f32 %v481, %v1359
    %v1361 = vpop.f32.mrf.mxu0
    %v1362 = vadd.f32 %v485, %v1361
    %v1363 = vpop.f32.mrf.mxu0
    %v1364 = vpop.f32.mrf.mxu0
    %1365 = vdwg.mxu0
    %1366 = vmatprep.subr.bf16.mxu0 %v1025
    %1367 = vmatpush1.bf16.msra.mxu0 %v1024
    %1368 = vmatprep.subr.bf16.mxu0 %v1016
    %1369 = vmatpush1.bf16.msra.mxu0 %v1015
    %1370 = vmatprep.subr.bf16.mxu0 %v1007
    %1371 = vmatpush1.bf16.msra.mxu0 %v1006
    %1372 = vmatprep.subr.bf16.mxu0 %v998
    %1373 = vmatpush1.bf16.msra.mxu0 %v997
    %1374 = vmatprep.subr.bf16.mxu0 %v989
    %1375 = vmatpush1.bf16.msra.mxu0 %v988
    %1376 = vmatprep.subr.bf16.mxu0 %v980
    %1377 = vmatpush1.bf16.msra.mxu0 %v979
    %1378 = vmatprep.subr.bf16.mxu0 %v971
    %1379 = vmatpush1.bf16.msra.mxu0 %v970
    %1380 = vmatprep.subr.bf16.mxu0 %v962
    %1381 = vmatpush1.bf16.msra.mxu0 %v961
    %1382 = vmatprep.subr.bf16.mxu0 %v1097
    %1383 = vmatpush2.bf16.msra.mxu0 %v1096
    %1384 = vmatprep.subr.bf16.mxu0 %v1088
    %1385 = vmatpush2.bf16.msra.mxu0 %v1087
    %1386 = vmatprep.subr.bf16.mxu0 %v1079
    %1387 = vmatpush2.bf16.msra.mxu0 %v1078
    %1388 = vmatprep.subr.bf16.mxu0 %v1070
    %1389 = vmatpush2.bf16.msra.mxu0 %v1069
    %1390 = vmatprep.subr.bf16.mxu0 %v1061
    %1391 = vmatpush2.bf16.msra.mxu0 %v1060
    %1392 = vmatprep.subr.bf16.mxu0 %v1052
    %1393 = vmatpush2.bf16.msra.mxu0 %v1051
    %1394 = vmatprep.subr.bf16.mxu0 %v1043
    %1395 = vmatpush2.bf16.msra.mxu0 %v1042
    %1396 = vmatprep.subr.bf16.mxu0 %v1034
    %1397 = vmatpush2.bf16.msra.mxu0 %v1033
    %1398 = vmatprep.mubr.bf16.mxu0 %v297
    %1399 = vmatmul.mubr.bf16.gmra.mxu0 %v296
    %v1400 = vpop.f32.mrf.mxu0
    %v1401 = vadd.f32 %v489, %v1400
    %v1402 = vpop.f32.mrf.mxu0
    %v1403 = vadd.f32 %v493, %v1402
    %v1404 = vpop.f32.mrf.mxu0
    %v1405 = vpop.f32.mrf.mxu0
    %1406 = vdwg.mxu0
    %1407 = vmatprep.subr.bf16.mxu0 0
    %1408 = vmatpush1.bf16.msra.mxu0 %v1026
    %1409 = vmatprep.subr.bf16.mxu0 0
    %1410 = vmatpush1.bf16.msra.mxu0 %v1017
    %1411 = vmatprep.subr.bf16.mxu0 0
    %1412 = vmatpush1.bf16.msra.mxu0 %v1008
    %1413 = vmatprep.subr.bf16.mxu0 0
    %1414 = vmatpush1.bf16.msra.mxu0 %v999
    %1415 = vmatprep.subr.bf16.mxu0 0
    %1416 = vmatpush1.bf16.msra.mxu0 %v990
    %1417 = vmatprep.subr.bf16.mxu0 0
    %1418 = vmatpush1.bf16.msra.mxu0 %v981
    %1419 = vmatprep.subr.bf16.mxu0 0
    %1420 = vmatpush1.bf16.msra.mxu0 %v972
    %1421 = vmatprep.subr.bf16.mxu0 0
    %1422 = vmatpush1.bf16.msra.mxu0 %v963
    %1423 = vmatprep.subr.bf16.mxu0 0
    %1424 = vmatpush2.bf16.msra.mxu0 %v1098
    %1425 = vmatprep.subr.bf16.mxu0 0
    %1426 = vmatpush2.bf16.msra.mxu0 %v1089
    %1427 = vmatprep.subr.bf16.mxu0 0
    %1428 = vmatpush2.bf16.msra.mxu0 %v1080
    %1429 = vmatprep.subr.bf16.mxu0 0
    %1430 = vmatpush2.bf16.msra.mxu0 %v1071
    %1431 = vmatprep.subr.bf16.mxu0 0
    %1432 = vmatpush2.bf16.msra.mxu0 %v1062
    %1433 = vmatprep.subr.bf16.mxu0 0
    %1434 = vmatpush2.bf16.msra.mxu0 %v1053
    %1435 = vmatprep.subr.bf16.mxu0 0
    %1436 = vmatpush2.bf16.msra.mxu0 %v1044
    %1437 = vmatprep.subr.bf16.mxu0 0
    %1438 = vmatpush2.bf16.msra.mxu0 %v1035
    %1439 = vmatprep.mubr.bf16.mxu0 %v297
    %1440 = vmatmul.mubr.bf16.gmra.mxu0 %v296
    %v1441 = vpop.f32.mrf.mxu0
    %v1442 = vadd.f32 %v497, %v1441
    %v1443 = vpop.f32.mrf.mxu0
    %v1444 = vpop.f32.mrf.mxu0
    %v1445 = vpop.f32.mrf.mxu0
    %1446 = vdwg.mxu0
    %v1447 = vand.u32 2147483647, %v1278
    %v1448 = vand.u32 2147483647, %v1280
    %v1449 = vand.u32 2147483647, %v1319
    %v1450 = vand.u32 2147483647, %v1321
    %v1451 = vand.u32 2147483647, %v1360
    %v1452 = vand.u32 2147483647, %v1362
    %v1453 = vand.u32 2147483647, %v1401
    %v1454 = vand.u32 2147483647, %v1403
    %v1455 = vand.u32 2147483647, %v1442
    %v1456 = vsub.f32 0.0, %v1447
    %v1457 = vsub.f32 0.0, %v1448
    %v1458 = vsub.f32 0.0, %v1449
    %v1459 = vsub.f32 0.0, %v1450
    %v1460 = vsub.f32 0.0, %v1451
    %v1461 = vsub.f32 0.0, %v1452
    %v1462 = vsub.f32 0.0, %v1453
    %v1463 = vsub.f32 0.0, %v1454
    %v1464 = vsub.f32 0.0, %v1455
    %v1465 = vmul.f32 %v1456, 1.442695
    %v1466 = vpow.pop %v1465
    %v1467 = vmul.f32 %v1457, 1.442695
    %v1468 = vpow.pop %v1467
    %v1469 = vmul.f32 %v1458, 1.442695
    %v1470 = vpow.pop %v1469
    %v1471 = vmul.f32 %v1459, 1.442695
    %v1472 = vpow.pop %v1471
    %v1473 = vmul.f32 %v1460, 1.442695
    %v1474 = vpow.pop %v1473
    %v1475 = vmul.f32 %v1461, 1.442695
    %v1476 = vpow.pop %v1475
    %v1477 = vmul.f32 %v1462, 1.442695
    %v1478 = vpow.pop %v1477
    %v1479 = vmul.f32 %v1463, 1.442695
    %v1480 = vpow.pop %v1479
    %v1481 = vmul.f32 %v1464, 1.442695
    %v1482 = vpow.pop %v1481
    %v1483 = vadd.f32 %v1466, 1.0
    %v1484 = vadd.f32 %v1468, 1.0
    %v1485 = vadd.f32 %v1470, 1.0
    %v1486 = vadd.f32 %v1472, 1.0
    %v1487 = vadd.f32 %v1474, 1.0
    %v1488 = vadd.f32 %v1476, 1.0
    %v1489 = vadd.f32 %v1478, 1.0
    %v1490 = vadd.f32 %v1480, 1.0
    %v1491 = vadd.f32 %v1482, 1.0
    %v1492 = vrcp.pop %v1483
    %v1493 = vrcp.pop %v1484
    %v1494 = vrcp.pop %v1485
    %v1495 = vrcp.pop %v1486
    %v1496 = vrcp.pop %v1487
    %v1497 = vrcp.pop %v1488
    %v1498 = vrcp.pop %v1489
    %v1499 = vrcp.pop %v1490
    %v1500 = vrcp.pop %v1491
    %vm1501 = vcmp.ge.f32.partialorder %v1278, 0.0
    %vm1502 = vcmp.ge.f32.partialorder %v1280, 0.0
    %vm1503 = vcmp.ge.f32.partialorder %v1319, 0.0
    %vm1504 = vcmp.ge.f32.partialorder %v1321, 0.0
    %vm1505 = vcmp.ge.f32.partialorder %v1360, 0.0
    %vm1506 = vcmp.ge.f32.partialorder %v1362, 0.0
    %vm1507 = vcmp.ge.f32.partialorder %v1401, 0.0
    %vm1508 = vcmp.ge.f32.partialorder %v1403, 0.0
    %vm1509 = vcmp.ge.f32.partialorder %v1442, 0.0
    %v1510 = vsub.f32 1.0, %v1492
    %v1511 = vsub.f32 1.0, %v1493
    %v1512 = vsub.f32 1.0, %v1494
    %v1513 = vsub.f32 1.0, %v1495
    %v1514 = vsub.f32 1.0, %v1496
    %v1515 = vsub.f32 1.0, %v1497
    %v1516 = vsub.f32 1.0, %v1498
    %v1517 = vsub.f32 1.0, %v1499
    %v1518 = vsub.f32 1.0, %v1500
    %v1519 = vsel %vm1501, %v1492, %v1510
    %v1520 = vsel %vm1502, %v1493, %v1511
    %v1521 = vsel %vm1503, %v1494, %v1512
    %v1522 = vsel %vm1504, %v1495, %v1513
    %v1523 = vsel %vm1505, %v1496, %v1514
    %v1524 = vsel %vm1506, %v1497, %v1515
    %v1525 = vsel %vm1507, %v1498, %v1516
    %v1526 = vsel %vm1508, %v1499, %v1517
    %v1527 = vsel %vm1509, %v1500, %v1518
    %1528 = vst [vmem:[#allocation8] sm:$0xff] %v1519
    %1529 = vst [vmem:[#allocation8 + $0x8] sm:$0xff] %v1520
    %1530 = vst [vmem:[#allocation8 + $0x10] sm:$0xff] %v1521
    %1531 = vst [vmem:[#allocation8 + $0x18] sm:$0xff] %v1522
    %1532 = vst [vmem:[#allocation8 + $0x20] sm:$0xff] %v1523
    %1533 = vst [vmem:[#allocation8 + $0x28] sm:$0xff] %v1524
    %1534 = vst [vmem:[#allocation8 + $0x30] sm:$0xff] %v1525
    %1535 = vst [vmem:[#allocation8 + $0x38] sm:$0xff] %v1526
    %1536 = vst [vmem:[#allocation8 + $0x40] sm:$0xff] %v1527
    // Predicated region
    $region42: #{generator_forward.1} parent=1 // pred_check
      _
    $region43: #{generator_forward.1} parent=1 // pred_check_branch
      %1538 = sbr.rel (0) target = $region45
    $region44: #{generator_forward.1} parent=1 // pred_region
      %s1540 = ssub.s32 1152, 1152
      %1541 = vsyncadd [#allocation4], %s1540
      %s1543 = sshll.u32 [#allocation8], 4
      %s1544 = int_to_ptr.vmem [resolvable:$true] %s1543
      %1546 = dma.vmem_to_hbm [thread:$0]  %s1544, 1152, %s7, [#allocation4]
    $region45: #{generator_forward.1} parent=1 // pred_fallthru
      _
    // Predicated region
    $region46: #{generator_forward.1} parent=1 // pred_check
      _
    $region47: #{generator_forward.1} parent=1 // pred_check_branch
      %1548 = sbr.rel (0) target = $region49
    $region48: #{generator_forward.1} parent=1 // pred_region
      %1549 = dma.done [#allocation4], 1152
    $region49: #{generator_forward.1} parent=1 // pred_fallthru
      _
    %1550 = vsyncpa [#allocation3], 1
    %1551 = vsyncpa [#allocation6], 1
    %1552 = vsyncpa [#allocation4], 1

</llo_original>
